<compile_context>
chip_gen: v6e
topology: v6e:2x2x1
jax: 0.10.0
libtpu: 0.0.40
codegen_flags: <defaults>
</compile_context>

<pallas_src>
import jax
import jax.numpy as jnp
from jax.experimental import pallas as pl
from jax.experimental.pallas import tpu as pltpu

NUM_GROUPS = 32
EPS = 1e-6
VMEM_LIMIT = 64 * 1024 * 1024  # above 16/32 MiB scoped defaults, <= physical on v5e/v6e/v7x


def _pick_tile(n, target, align=128):
    """Largest multiple of `align` that divides n and is <= target; else full extent n.

    Full extent is always legal (exempt from the (8,128) block constraint); for pathological
    n with no aligned divisor this falls back to a single tile (may cost VMEM for huge HW).
    """
    if n <= target:
        return n
    t = (min(target, n) // align) * align
    while t >= align:
        if n % t == 0:
            return t
        t -= align
    return n


# ---------------------------------------------------------------------------
# Kernel 1: per-batch, per-channel sum and sum-of-squares, native (B, C, HW) layout.
#   grid (B, HW/TS); reduction axis last; accumulates into a resident (1, C, 1) output.
# ---------------------------------------------------------------------------
def _stats_kernel(x_ref, sum_ref, sumsq_ref):
    @pl.when(pl.program_id(1) == 0)
    def _():
        sum_ref[...] = jnp.zeros_like(sum_ref)
        sumsq_ref[...] = jnp.zeros_like(sumsq_ref)

    x = x_ref[0].astype(jnp.float32)                              # (C, TS)
    sum_ref[0] += jnp.sum(x, axis=-1, keepdims=True)              # (C, 1)
    sumsq_ref[0] += jnp.sum(x * x, axis=-1, keepdims=True)


# ---------------------------------------------------------------------------
# Kernel 2: GroupNorm as one FMA + fused (3C, C) QKV matmul, native NCHW tiles.
#   Writes q transposed to (B, HW, C) (one in-kernel XLU transpose) and k/v as (B, 2C, HW).
# ---------------------------------------------------------------------------
def _norm_qkv_kernel(x_ref, a_ref, b_ref, w_ref, bias_ref, q_ref, kv_ref):
    x = x_ref[0].astype(jnp.float32)                              # (C, TR)
    h = x * a_ref[0] + b_ref[0]                                   # norm + affine as single FMA
    qkv = jnp.dot(w_ref[...], h.astype(jnp.bfloat16),             # (3C, TR), f32 accumulation
                  preferred_element_type=jnp.float32)
    qkv = qkv + bias_ref[...]                                     # (3C, 1) broadcast over lanes
    C = x.shape[0]
    q_ref[0] = jnp.transpose(qkv[:C, :]).astype(q_ref.dtype)      # (TR, C) bf16 (scale folded)
    kv_ref[0] = qkv[C:, :].astype(kv_ref.dtype)                   # (2C, TR) bf16


# ---------------------------------------------------------------------------
# Kernel 3: flash-style attention + proj_out + residual, NCHW output tile.
#   grid (B, HW/TQ, HW/TK), kv axis innermost ("arbitrary"); online-softmax scratch in VMEM.
# ---------------------------------------------------------------------------
def _flash_kernel(q_ref, k_ref, v_ref, x_ref, wp_ref, bp_ref, out_ref,
                  m_sc, l_sc, acc_sc):
    ik = pl.program_id(2)

    @pl.when(ik == 0)
    def _():
        m_sc[...] = jnp.full_like(m_sc, -jnp.inf)
        l_sc[...] = jnp.zeros_like(l_sc)
        acc_sc[...] = jnp.zeros_like(acc_sc)

    q = q_ref[0]                                                  # (TQ, C) bf16 (scale folded)
    k = k_ref[0]                                                  # (C, TK) bf16
    s = jnp.dot(q, k, preferred_element_type=jnp.float32)         # (TQ, TK) f32, standard matmul

    m_prev = m_sc[...]
    m_new = jnp.maximum(m_prev, jnp.max(s, axis=-1, keepdims=True))
    alpha = jnp.exp(m_prev - m_new)
    p = jnp.exp(s - m_new)
    l_sc[...] = alpha * l_sc[...] + jnp.sum(p, axis=-1, keepdims=True)
    # acc (TQ, C) += p (TQ, TK) . v (C, TK) contracted on the TK axis (trans_b form).
    acc_sc[...] = alpha * acc_sc[...] + jax.lax.dot_general(
        p.astype(v_ref.dtype), v_ref[0], (((1,), (1,)), ((), ())),
        preferred_element_type=jnp.float32)
    m_sc[...] = m_new

    @pl.when(ik == pl.num_programs(2) - 1)
    def _():
        h = acc_sc[...] * pl.reciprocal(l_sc[...], approx=True)   # (TQ, C) f32
        # proj in NCHW layout: (C_out, TQ) = wp (C_out, C_in) . h (TQ, C_in) contracted on C_in.
        proj = jax.lax.dot_general(
            wp_ref[...], h.astype(jnp.bfloat16), (((1,), (1,)), ((), ())),
            preferred_element_type=jnp.float32) + bp_ref[...]      # (C, TQ)
        out_ref[0] = (x_ref[0].astype(jnp.float32) + proj).astype(out_ref.dtype)


def attn_block(x, params, *, ts=2048, tr=512, tq=512, tk=256):
    """x: (B, C, H, W) float32, NCHW (PyTorch convention)."""
    B, C, H, W = x.shape
    assert C % NUM_GROUPS == 0, "GroupNorm(32, C) needs C % 32 == 0"
    assert C % 128 == 0, "channel axis must be lane-aligned (C % 128 == 0)"
    HW = H * W
    C3 = 3 * C

    TS = _pick_tile(HW, ts)
    TR = _pick_tile(HW, tr)
    TQ = _pick_tile(HW, tq)
    TK = _pick_tile(HW, tk)

    # Native NCHW: just merge the spatial dims, no HBM transpose.
    x_l = x.reshape(B, C, HW)

    # ---- Pass 1: per-channel sum / sumsq (the only HW-sized GroupNorm reduction) ----
    sum_c, sumsq_c = pl.pallas_call(
        _stats_kernel,
        out_shape=(jax.ShapeDtypeStruct((B, C, 1), jnp.float32),
                   jax.ShapeDtypeStruct((B, C, 1), jnp.float32)),
        grid=(B, HW // TS),
        in_specs=[pl.BlockSpec((1, C, TS), lambda b, i: (b, 0, i))],
        out_specs=(pl.BlockSpec((1, C, 1), lambda b, i: (b, 0, 0)),
                   pl.BlockSpec((1, C, 1), lambda b, i: (b, 0, 0))),
        compiler_params=pltpu.CompilerParams(
            dimension_semantics=("parallel", "arbitrary"),
            vmem_limit_bytes=VMEM_LIMIT),
    )(x_l)

    # ---- Tiny O(B*C) group-statistics finish (plain JAX; negligible) ----
    cpg = C // NUM_GROUPS
    mean_c = sum_c[:, :, 0] / HW                                       # (B, C)
    meansq_c = sumsq_c[:, :, 0] / HW
    mean_g = mean_c.reshape(B, NUM_GROUPS, cpg).mean(axis=-1)          # (B, G)
    meansq_g = meansq_c.reshape(B, NUM_GROUPS, cpg).mean(axis=-1)      # (B, G)
    var_g = jnp.maximum(meansq_g - mean_g * mean_g, 0.0)               # clamp >= 0
    inv_g = jax.lax.rsqrt(var_g + EPS)
    inv_c = jnp.repeat(inv_g, cpg, axis=-1)                            # (B, C)
    gmean_c = jnp.repeat(mean_g, cpg, axis=-1)                         # (B, C)
    a2 = inv_c * params["gamma"][None, :]                              # (B, C)
    b2 = params["beta"][None, :] - gmean_c * a2                        # (B, C)
    a = a2.reshape(B, C, 1)
    b_aff = b2.reshape(B, C, 1)

    # ---- Fused QKV weights (3C, C) with 1/sqrt(C) folded into the q slice; bf16 operands ----
    scale = float(C) ** (-0.5)
    w_qkv = jnp.concatenate(
        [params["wq"] * scale, params["wk"], params["wv"]], axis=0
    ).astype(jnp.bfloat16)                                             # (3C, C)
    b_qkv = jnp.concatenate(
        [params["bq"] * scale, params["bk"], params["bv"]]
    ).reshape(C3, 1).astype(jnp.float32)                               # (3C, 1)
    wp = params["wp"].astype(jnp.bfloat16)                             # (C_out, C_in)
    bp = params["bp"].reshape(C, 1).astype(jnp.float32)                # (C, 1)

    # ---- Pass 2: GroupNorm FMA + single fused QKV matmul on native (C, TR) tiles ----
    q_arr, kv_arr = pl.pallas_call(
        _norm_qkv_kernel,
        out_shape=(jax.ShapeDtypeStruct((B, HW, C), jnp.bfloat16),     # q, transposed in-kernel
                   jax.ShapeDtypeStruct((B, 2 * C, HW), jnp.bfloat16)),  # k (rows :C), v (rows C:)
        grid=(B, HW // TR),
        in_specs=[
            pl.BlockSpec((1, C, TR), lambda b, i: (b, 0, i)),
            pl.BlockSpec((1, C, 1), lambda b, i: (b, 0, 0)),
            pl.BlockSpec((1, C, 1), lambda b, i: (b, 0, 0)),
            pl.BlockSpec((C3, C), lambda b, i: (0, 0)),
            pl.BlockSpec((C3, 1), lambda b, i: (0, 0)),
        ],
        out_specs=(pl.BlockSpec((1, TR, C), lambda b, i: (b, i, 0)),
                   pl.BlockSpec((1, 2 * C, TR), lambda b, i: (b, 0, i))),
        compiler_params=pltpu.CompilerParams(
            dimension_semantics=("parallel", "parallel"),
            vmem_limit_bytes=VMEM_LIMIT),
    )(x_l, a, b_aff, w_qkv, b_qkv)

    # ---- Pass 3: flash attention over kv tiles + proj_out + residual (NCHW output) ----
    out = pl.pallas_call(
        _flash_kernel,
        out_shape=jax.ShapeDtypeStruct((B, C, HW), x.dtype),
        grid=(B, HW // TQ, HW // TK),
        in_specs=[
            pl.BlockSpec((1, TQ, C), lambda b, iq, ik: (b, iq, 0)),    # q   (HW, C) layout
            pl.BlockSpec((1, C, TK), lambda b, iq, ik: (b, 0, ik)),    # k   (C, HW) layout
            pl.BlockSpec((1, C, TK), lambda b, iq, ik: (b, 1, ik)),    # v   (C, HW) layout
            pl.BlockSpec((1, C, TQ), lambda b, iq, ik: (b, 0, iq)),    # residual x (NCHW)
            pl.BlockSpec((C, C), lambda b, iq, ik: (0, 0)),            # wp
            pl.BlockSpec((C, 1), lambda b, iq, ik: (0, 0)),            # bp
        ],
        out_specs=pl.BlockSpec((1, C, TQ), lambda b, iq, ik: (b, 0, iq)),
        scratch_shapes=[
            pltpu.VMEM((TQ, 1), jnp.float32),   # running max
            pltpu.VMEM((TQ, 1), jnp.float32),   # running denominator
            pltpu.VMEM((TQ, C), jnp.float32),   # output accumulator
        ],
        compiler_params=pltpu.CompilerParams(
            dimension_semantics=("parallel", "parallel", "arbitrary"),
            vmem_limit_bytes=VMEM_LIMIT),
    )(q_arr, kv_arr, kv_arr, x_l, wp, bp)

    # (B, C, HW) -> (B, C, H, W): pure reshape, no data movement.
    return out.reshape(B, C, H, W)


def ref_attn_block(x, params):
    """Pure-JAX f32 reference mirroring the PyTorch forward."""
    B, C, H, W = x.shape
    G = C // NUM_GROUPS
    xr = x.reshape(B, NUM_GROUPS, G, H, W)
    mean = xr.mean(axis=(2, 3, 4), keepdims=True)
    var = ((xr - mean) ** 2).mean(axis=(2, 3, 4), keepdims=True)
    hn = ((xr - mean) / jnp.sqrt(var + EPS)).reshape(B, C, H, W)
    hn = hn * params["gamma"][None, :, None, None] + params["beta"][None, :, None, None]

    def conv1x1(t, w, b):
        return jnp.einsum("bchw,oc->bohw", t, w) + b[None, :, None, None]

    q = conv1x1(hn, params["wq"], params["bq"])
    k = conv1x1(hn, params["wk"], params["bk"])
    v = conv1x1(hn, params["wv"], params["bv"])
    q = q.reshape(B, C, H * W).transpose(0, 2, 1)           # (B, HW, C)
    k = k.reshape(B, C, H * W)                               # (B, C, HW)
    w_ = jnp.einsum("bic,bcj->bij", q, k) * (int(C) ** (-0.5))
    w_ = jax.nn.softmax(w_, axis=2)
    v = v.reshape(B, C, H * W)
    h_ = jnp.einsum("bcj,bij->bci", v, w_).reshape(B, C, H, W)
    h_ = conv1x1(h_, params["wp"], params["bp"])
    return x + h_


def make_params(key, C):
    keys = jax.random.split(key, 10)
    p = {
        "gamma": jnp.ones((C,), jnp.float32) + 0.05 * jax.random.normal(keys[8], (C,), jnp.float32),
        "beta": 0.05 * jax.random.normal(keys[9], (C,), jnp.float32),
        "wq": 0.1 * jax.random.normal(keys[0], (C, C), jnp.float32),
        "bq": 0.1 * jax.random.normal(keys[1], (C,), jnp.float32),
        "wk": 0.1 * jax.random.normal(keys[2], (C, C), jnp.float32),
        "bk": 0.1 * jax.random.normal(keys[3], (C,), jnp.float32),
        "wv": 0.1 * jax.random.normal(keys[4], (C, C), jnp.float32),
        "bv": 0.1 * jax.random.normal(keys[5], (C,), jnp.float32),
        "wp": 0.1 * jax.random.normal(keys[6], (C, C), jnp.float32),
        "bp": 0.1 * jax.random.normal(keys[7], (C,), jnp.float32),
    }
    return p


if __name__ == "__main__":
    # GroupNorm(32, C) needs C % 32 == 0; C = 128 keeps the channel axis lane-dense.
    B, C, H, W = 2, 128, 16, 16
    key = jax.random.PRNGKey(0)
    kx, kp = jax.random.split(key)
    x = jax.random.normal(kx, (B, C, H, W), jnp.float32)
    params = make_params(kp, C)

    out = attn_block(x, params)
    out = jax.block_until_ready(out)

    ref = ref_attn_block(x, params)
    assert out.shape == (B, C, H, W)
    max_err = float(jnp.max(jnp.abs(out - ref)))
    rel_err = float(jnp.linalg.norm(out - ref) / jnp.linalg.norm(ref))
    # bf16 matmul operands (f32 accumulation) -> tolerance looser than pure-f32.
    assert max_err < 0.25 and rel_err < 5e-2, (max_err, rel_err)
    print("KERNEL_OK")
</pallas_src>

<mosaic_0001>
module attributes {stable_mosaic.version = 11 : i64} {
  func.func @_stats_kernel(%arg0: i32, %arg1: i32, %arg2: memref<1x128x256xf32, #tpu.memory_space<vmem>>, %arg3: memref<1x128x1xf32, #tpu.memory_space<vmem>>, %arg4: memref<1x128x1xf32, #tpu.memory_space<vmem>>) attributes {dimension_semantics = [#tpu.dimension_semantics<parallel>, #tpu.dimension_semantics<arbitrary>], iteration_bounds = array<i64: 2, 1>, scalar_prefetch = 0 : i64, scratch_operands = 0 : i64, tpu.core_type = #tpu.core_type<tc>, window_params = [{transform_indices = @transform_0, window_bounds = array<i64: 1, 128, 256>}, {transform_indices = @transform_1, window_bounds = array<i64: 1, 128, 1>}, {transform_indices = @transform_2, window_bounds = array<i64: 1, 128, 1>}]} {
    %c0_i32 = arith.constant 0 : i32
    %0 = arith.cmpi eq, %arg1, %c0_i32 : i32
    %1 = arith.extui %0 : i1 to i32
    %c0_i32_0 = arith.constant 0 : i32
    %2 = arith.cmpi ne, %1, %c0_i32_0 : i32
    scf.if %2 {
      %cst_16 = arith.constant 0.000000e+00 : f32
      %22 = vector.broadcast %cst_16 : f32 to vector<1x128x1xf32>
      %c0_17 = arith.constant 0 : index
      %c0_18 = arith.constant 0 : index
      %c0_19 = arith.constant 0 : index
      %23 = vector.load %arg3[%c0_17, %c0_18, %c0_19] : memref<1x128x1xf32, #tpu.memory_space<vmem>>, vector<1x128x1xf32>
      tpu.vector_store %arg3[%c0_17, %c0_18, %c0_19], %22 {strides = array<i32>} : memref<1x128x1xf32, #tpu.memory_space<vmem>>, vector<1x128x1xf32>,
      %cst_20 = arith.constant 0.000000e+00 : f32
      %24 = vector.broadcast %cst_20 : f32 to vector<1x128x1xf32>
      %c0_21 = arith.constant 0 : index
      %c0_22 = arith.constant 0 : index
      %c0_23 = arith.constant 0 : index
      %25 = vector.load %arg4[%c0_21, %c0_22, %c0_23] : memref<1x128x1xf32, #tpu.memory_space<vmem>>, vector<1x128x1xf32>
      tpu.vector_store %arg4[%c0_21, %c0_22, %c0_23], %24 {strides = array<i32>} : memref<1x128x1xf32, #tpu.memory_space<vmem>>, vector<1x128x1xf32>,
    } else {
    }
    %c0 = arith.constant 0 : index
    %c0_1 = arith.constant 0 : index
    %c0_2 = arith.constant 0 : index
    %3 = vector.load %arg2[%c0, %c0_1, %c0_2] : memref<1x128x256xf32, #tpu.memory_space<vmem>>, vector<1x128x256xf32>
    %4 = vector.shape_cast %3 : vector<1x128x256xf32> to vector<128x256xf32>
    %c0_3 = arith.constant 0 : index
    %c0_4 = arith.constant 0 : index
    %c0_5 = arith.constant 0 : index
    %5 = vector.load %arg3[%c0_3, %c0_4, %c0_5] : memref<1x128x1xf32, #tpu.memory_space<vmem>>, vector<1x128x1xf32>
    %6 = vector.shape_cast %5 : vector<1x128x1xf32> to vector<128x1xf32>
    %cst = arith.constant dense<0.000000e+00> : vector<128xf32>
    %7 = vector.multi_reduction <add>, %4, %cst [1] : vector<128x256xf32> to vector<128xf32>
    %8 = vector.shape_cast %7 : vector<128xf32> to vector<128x1xf32>
    %9 = arith.addf %6, %8 : vector<128x1xf32>
    %c0_6 = arith.constant 0 : index
    %c0_7 = arith.constant 0 : index
    %c0_8 = arith.constant 0 : index
    %10 = vector.load %arg3[%c0_6, %c0_7, %c0_8] : memref<1x128x1xf32, #tpu.memory_space<vmem>>, vector<1x128x1xf32>
    %11 = vector.shape_cast %10 : vector<1x128x1xf32> to vector<128x1xf32>
    %12 = vector.shape_cast %9 : vector<128x1xf32> to vector<1x128x1xf32>
    tpu.vector_store %arg3[%c0_6, %c0_7, %c0_8], %12 {strides = array<i32>} : memref<1x128x1xf32, #tpu.memory_space<vmem>>, vector<1x128x1xf32>,
    %c0_9 = arith.constant 0 : index
    %c0_10 = arith.constant 0 : index
    %c0_11 = arith.constant 0 : index
    %13 = vector.load %arg4[%c0_9, %c0_10, %c0_11] : memref<1x128x1xf32, #tpu.memory_space<vmem>>, vector<1x128x1xf32>
    %14 = vector.shape_cast %13 : vector<1x128x1xf32> to vector<128x1xf32>
    %15 = arith.mulf %4, %4 : vector<128x256xf32>
    %cst_12 = arith.constant dense<0.000000e+00> : vector<128xf32>
    %16 = vector.multi_reduction <add>, %15, %cst_12 [1] : vector<128x256xf32> to vector<128xf32>
    %17 = vector.shape_cast %16 : vector<128xf32> to vector<128x1xf32>
    %18 = arith.addf %14, %17 : vector<128x1xf32>
    %c0_13 = arith.constant 0 : index
    %c0_14 = arith.constant 0 : index
    %c0_15 = arith.constant 0 : index
    %19 = vector.load %arg4[%c0_13, %c0_14, %c0_15] : memref<1x128x1xf32, #tpu.memory_space<vmem>>, vector<1x128x1xf32>
    %20 = vector.shape_cast %19 : vector<1x128x1xf32> to vector<128x1xf32>
    %21 = vector.shape_cast %18 : vector<128x1xf32> to vector<1x128x1xf32>
    tpu.vector_store %arg4[%c0_13, %c0_14, %c0_15], %21 {strides = array<i32>} : memref<1x128x1xf32, #tpu.memory_space<vmem>>, vector<1x128x1xf32>,
    return
  }
  func.func @transform_0(%arg0: i32, %arg1: i32) -> (i32, i32, i32) {
    %c0_i32 = arith.constant 0 : i32
    %c0_i32_0 = arith.constant 0 : i32
    return %arg0, %c0_i32, %arg1 : i32, i32, i32
  }
  func.func @transform_1(%arg0: i32, %arg1: i32) -> (i32, i32, i32) {
    %c0_i32 = arith.constant 0 : i32
    %c0_i32_0 = arith.constant 0 : i32
    %c0_i32_1 = arith.constant 0 : i32
    return %arg0, %c0_i32, %c0_i32_0 : i32, i32, i32
  }
  func.func @transform_2(%arg0: i32, %arg1: i32) -> (i32, i32, i32) {
    %c0_i32 = arith.constant 0 : i32
    %c0_i32_0 = arith.constant 0 : i32
    %c0_i32_1 = arith.constant 0 : i32
    return %arg0, %c0_i32, %c0_i32_0 : i32, i32, i32
  }
}

</mosaic_0001>

<llo_original>
// kernel: tpu_custom_call.1
$region0: #{tpu_custom_call.1}
  #allocation0 [shape = 'u32[]', space=smem, size = 0x4, offset = 0x4, fixed_abs, tag = 'smem constant byte address 0x4 - core index']
  #allocation1 [shape = 'u32[144,128]{1,0:T(1,128)}', space=vmem, size = 0x12000, scoped, tag = 'internal scratch']
  %s0 = inlined_call_operand.hbm [shape: f32[2,128,256], index: 0, kind: input, shape index: {}]
  %s1 = inlined_call_operand.vmem [shape: f32[2,128,1], index: 1, kind: output, shape index: {0}]
  %s2 = inlined_call_operand.vmem [shape: f32[2,128,1], index: 2, kind: output, shape index: {1}]
  %3 = xla_tuple %s1, %s2
  %s4 = sld [smem:[#allocation0]]
  $region53: #{tpu_custom_call.1} parent=0
    _
  %s6 = ssub.s32 1, %s4
  %s7 = scalar_select 0, %s6, %s4
  $region1: #{tpu_custom_call.1} parent=0
    #allocation2 [shape = 'u8[262144]{0}', space=vmem, size = 0x40000, scoped, tag = 'input window, operand 0']
    #allocation3 [shape = 's32[2]{0}', space=sflag, size = 0x8, scoped, tag = 'scoped memory for tpu_custom_call.1']
    %8 = vsyncpa [#allocation3], 0
    %s9 = scalar_lea.sflag [#allocation3], 1
    %10 = vsyncpa %s9, 0
    loop: start=0, step=1, limit=4
    $region2: #{tpu_custom_call.1} parent=1 // loop_pre_header
      _
    $region3: #{tpu_custom_call.1} parent=1 // loop_header
      %s12 = sphi 0, %s16
      %p13 = scmp.ge.s32.totalorder %s12, 4
      %s19 = sphi 0, %s31
      %s20 = sphi 0, %s27
      %s21 = sphi 0, %s19
      %s22 = sphi 0, %s20
      %s23 = sphi 0, %s21
      %s24 = sphi 0, %s22
      %s36 = sphi 0, %s38
      %s39 = sphi 0, %s36
      %s40 = sphi 0, %s39
      %s56 = sphi 0, %s40
      %s62 = sphi 0, %s64
      %s65 = sphi 0, %s62
      %s66 = sphi 0, %s65
      %s82 = sphi 0, %s66
      %s88 = sphi 0, %s90
      %s91 = sphi 0, %s88
      %s92 = sphi 0, %s91
      %s108 = sphi 0, %s92
    $region4: #{tpu_custom_call.1} parent=1 // loop_header_branch
      %15 = sbr.rel (%p13) target = $region8
    $region5: #{tpu_custom_call.1} parent=1 // loop_body
      %s17 = ssub.s32 %s12, 1
      %s18 = ssub.s32 %s12, 2
      %s25 = sadd.s32 1, %s20
      %p26 = scmp.ge.s32.totalorder %s25, 1
      %s27 = scalar_select %p26, 0, %s25
      %s28 = sadd.s32 1, %s19
      %s29 = scalar_select %p26, %s28, %s19
      %p30 = scmp.ge.s32.totalorder %s29, 2
      %s31 = scalar_select %p30, 0, %s29
      %s32 = ssub.s32 %s19, %s31
      %s33 = ssub.s32 %s20, %s27
      %s34 = sor.u32 %s32, %s33
      %p35 = scmp.eq.s32.totalorder %s34, 0
      %s37 = sadd.s32 %s36, 1
      %s38 = scalar_select %p35, %s36, %s37
      %p41 = pneg %p35
      %p42 = scmp.eq.s32.totalorder %s12, 1
      %p43 = por %p41, %p42
      %p44 = scmp.ne.s32.totalorder %s36, %s39
      %p45 = scmp.eq.s32.totalorder %s12, 0
      %p46 = por %p44, %p45
      %p47 = scmp.ne.s32.totalorder %s36, %s39
      %p48 = scmp.eq.s32.totalorder %s17, 1
      %p49 = por %p47, %p48
      %p50 = scmp.ne.s32.totalorder %s39, %s40
      %p51 = scmp.eq.s32.totalorder %s17, 0
      %p52 = por %p50, %p51
      %p53 = scmp.ne.s32.totalorder %s39, %s40
      %p54 = scmp.eq.s32.totalorder %s18, 1
      %p55 = por %p53, %p54
      %p57 = scmp.ne.s32.totalorder %s40, %s56
      %p58 = scmp.eq.s32.totalorder %s18, 0
      %p59 = por %p57, %p58
      %s60 = ssub.s32 %s19, %s31
      %p61 = scmp.eq.s32.totalorder %s60, 0
      %s63 = sadd.s32 %s62, 1
      %s64 = scalar_select %p61, %s62, %s63
      %p67 = pneg %p61
      %p68 = scmp.eq.s32.totalorder %s12, 1
      %p69 = por %p67, %p68
      %p70 = scmp.ne.s32.totalorder %s62, %s65
      %p71 = scmp.eq.s32.totalorder %s12, 0
      %p72 = por %p70, %p71
      %p73 = scmp.ne.s32.totalorder %s62, %s65
      %p74 = scmp.eq.s32.totalorder %s17, 1
      %p75 = por %p73, %p74
      %p76 = scmp.ne.s32.totalorder %s65, %s66
      %p77 = scmp.eq.s32.totalorder %s17, 0
      %p78 = por %p76, %p77
      %p79 = scmp.ne.s32.totalorder %s65, %s66
      %p80 = scmp.eq.s32.totalorder %s18, 1
      %p81 = por %p79, %p80
      %p83 = scmp.ne.s32.totalorder %s66, %s82
      %p84 = scmp.eq.s32.totalorder %s18, 0
      %p85 = por %p83, %p84
      %s86 = ssub.s32 %s19, %s31
      %p87 = scmp.eq.s32.totalorder %s86, 0
      %s89 = sadd.s32 %s88, 1
      %s90 = scalar_select %p87, %s88, %s89
      %p93 = pneg %p87
      %p94 = scmp.eq.s32.totalorder %s12, 1
      %p95 = por %p93, %p94
      %p96 = scmp.ne.s32.totalorder %s88, %s91
      %p97 = scmp.eq.s32.totalorder %s12, 0
      %p98 = por %p96, %p97
      %p99 = scmp.ne.s32.totalorder %s88, %s91
      %p100 = scmp.eq.s32.totalorder %s17, 1
      %p101 = por %p99, %p100
      %p102 = scmp.ne.s32.totalorder %s91, %s92
      %p103 = scmp.eq.s32.totalorder %s17, 0
      %p104 = por %p102, %p103
      %p105 = scmp.ne.s32.totalorder %s91, %s92
      %p106 = scmp.eq.s32.totalorder %s18, 1
      %p107 = por %p105, %p106
      %p109 = scmp.ne.s32.totalorder %s92, %s108
      %p110 = scmp.eq.s32.totalorder %s18, 0
      %p111 = por %p109, %p110
      %p112 = scmp.le.s32.totalorder 1, %s12
      %p113 = scmp.lt.s32.totalorder %s12, 3
      %p114 = pnand %p112, %p113
      %p115 = pneg %p114
      // Predicated region
      $region9: #{tpu_custom_call.1} parent=5 // pred_check
        _
      $region10: #{tpu_custom_call.1} parent=5 // pred_check_branch
        %117 = sbr.rel (%p114) target = $region12
      $region11: #{tpu_custom_call.1} parent=5 // pred_region
        %s118 = ssub.s32 %s12, 1
      $region12: #{tpu_custom_call.1} parent=5 // pred_fallthru
        _
      %p119 = scmp.lt.s32.totalorder %s12, 2
      // Predicated region
      $region13: #{tpu_custom_call.1} parent=5 // pred_check
        %p120 = pneg %p119
      $region14: #{tpu_custom_call.1} parent=5 // pred_check_branch
        %122 = sbr.rel (%p120) target = $region16
      $region15: #{tpu_custom_call.1} parent=5 // pred_region
        // Predicated region
        $region17: #{tpu_custom_call.1} parent=15 // pred_check
          %p123 = pneg %p46
        $region18: #{tpu_custom_call.1} parent=15 // pred_check_branch
          %125 = sbr.rel (%p123) target = $region20
        $region19: #{tpu_custom_call.1} parent=15 // pred_region
          %s126 = sand.u32 %s36, 1
          %s127 = scalar_lea.sflag [#allocation3], %s126
          %s128 = sand.u32 %s36, 1
          %s129 = smul.addr %s128, 256
          %s130 = scalar_lea.vmem [#allocation2], %s129
          %s131 = smul.u32 2, %s20
          %s133 = ssub.s32 4096, 4096
          %134 = vsyncadd %s127, %s133
          %s135 = smul.addr %s19, 32
          %s136 = sadd.s32 %s131, %s135
          %s137 = smul.addr %s136, 128
          %s138 = scalar_lea.hbm %s0, %s137
          %s139 = sshll.u32 %s130, 4
          %s140 = int_to_ptr.vmem [resolvable:$true] %s139
          %145 = dma.hbm_to_vmem [thread:$0]  %s138, 4096, %s140, %s127, 256, 256, 16
        $region20: #{tpu_custom_call.1} parent=15 // pred_fallthru
          _
      $region16: #{tpu_custom_call.1} parent=5 // pred_fallthru
        _
      %p146 = scmp.le.s32.totalorder 1, %s12
      %p147 = scmp.lt.s32.totalorder %s12, 3
      %p148 = pnand %p146, %p147
      %p149 = pneg %p148
      // Predicated region
      $region21: #{tpu_custom_call.1} parent=5 // pred_check
        _
      $region22: #{tpu_custom_call.1} parent=5 // pred_check_branch
        %151 = sbr.rel (%p148) target = $region24
      $region23: #{tpu_custom_call.1} parent=5 // pred_region
        %s152 = ssub.s32 %s12, 1
        %s153 = sand.u32 %s39, 1
        %s154 = scalar_lea.sflag [#allocation3], %s153
        %s155 = sand.u32 %s39, 1
        %s156 = smul.addr %s155, 256
        %s157 = scalar_lea.vmem [#allocation2], %s156
        // Predicated region
        $region25: #{tpu_custom_call.1} parent=23 // pred_check
          %p158 = pneg %p52
        $region26: #{tpu_custom_call.1} parent=23 // pred_check_branch
          %160 = sbr.rel (%p158) target = $region28
        $region27: #{tpu_custom_call.1} parent=23 // pred_region
          %161 = dma.done %s154, 4096
        $region28: #{tpu_custom_call.1} parent=23 // pred_fallthru
          _
        %s162 = sand.u32 %s39, 1
        %s163 = scalar_lea.sflag [#allocation3], %s162
        %s164 = sand.u32 %s39, 1
        %s165 = smul.addr %s164, 256
        %s166 = scalar_lea.vmem [#allocation2], %s165
        %p167 = pneg %p52
        %p168 = pneg %p49
        %p169 = pneg %p78
        %p170 = pneg %p75
        %p171 = scmp.lt.s32.totalorder %s21, 1
        %s172 = scalar_select %p171, %s21, 1
        %s173 = smul.addr %s172, 16
        %s174 = smul.addr %s173, 8
        %s175 = scalar_lea.vmem %s1, %s174
        %p176 = pneg %p104
        %p177 = pneg %p101
        %p178 = scmp.lt.s32.totalorder %s21, 1
        %s179 = scalar_select %p178, %s21, 1
        %s180 = smul.addr %s179, 16
        %s181 = smul.addr %s180, 8
        %s182 = scalar_lea.vmem %s2, %s181
        %s183 = smul.u32 2, %s22
        %p184 = scmp.lt.s32.totalorder %s21, 1
        %s185 = scalar_select %p184, %s21, 1
        %s186 = smul.addr %s185, 16
        %s187 = smul.addr %s186, 8
        %s188 = scalar_lea.vmem %s1, %s187
        %p189 = scmp.lt.s32.totalorder %s21, 1
        %s190 = scalar_select %p189, %s21, 1
        %s191 = smul.addr %s190, 16
        %s192 = smul.addr %s191, 8
        %s193 = scalar_lea.vmem %s2, %s192
        %p194 = scmp.eq.s32.totalorder %s22, 0
        // Predicated region
        $region29: #{tpu_custom_call.1} parent=23 // pred_check
          %p195 = pneg %p194
        $region30: #{tpu_custom_call.1} parent=23 // pred_check_branch
          %197 = sbr.rel (%p195) target = $region32
        $region31: #{tpu_custom_call.1} parent=23 // pred_region
          %vm198 = vcmask 7168
          %199 = vst.msk [vmem:[%s188] sm:$0xff] %vm198, 0.0
          %200 = vst.msk [vmem:[%s188 + $0x8] sm:$0xff] %vm198, 0.0
          %201 = vst.msk [vmem:[%s188 + $0x10] sm:$0xff] %vm198, 0.0
          %202 = vst.msk [vmem:[%s188 + $0x18] sm:$0xff] %vm198, 0.0
          %203 = vst.msk [vmem:[%s188 + $0x20] sm:$0xff] %vm198, 0.0
          %204 = vst.msk [vmem:[%s188 + $0x28] sm:$0xff] %vm198, 0.0
          %205 = vst.msk [vmem:[%s188 + $0x30] sm:$0xff] %vm198, 0.0
          %206 = vst.msk [vmem:[%s188 + $0x38] sm:$0xff] %vm198, 0.0
          %207 = vst.msk [vmem:[%s188 + $0x40] sm:$0xff] %vm198, 0.0
          %208 = vst.msk [vmem:[%s188 + $0x48] sm:$0xff] %vm198, 0.0
          %209 = vst.msk [vmem:[%s188 + $0x50] sm:$0xff] %vm198, 0.0
          %210 = vst.msk [vmem:[%s188 + $0x58] sm:$0xff] %vm198, 0.0
          %211 = vst.msk [vmem:[%s188 + $0x60] sm:$0xff] %vm198, 0.0
          %212 = vst.msk [vmem:[%s188 + $0x68] sm:$0xff] %vm198, 0.0
          %213 = vst.msk [vmem:[%s188 + $0x70] sm:$0xff] %vm198, 0.0
          %214 = vst.msk [vmem:[%s188 + $0x78] sm:$0xff] %vm198, 0.0
          %215 = vst.msk [vmem:[%s193] sm:$0xff] %vm198, 0.0
          %216 = vst.msk [vmem:[%s193 + $0x8] sm:$0xff] %vm198, 0.0
          %217 = vst.msk [vmem:[%s193 + $0x10] sm:$0xff] %vm198, 0.0
          %218 = vst.msk [vmem:[%s193 + $0x18] sm:$0xff] %vm198, 0.0
          %219 = vst.msk [vmem:[%s193 + $0x20] sm:$0xff] %vm198, 0.0
          %220 = vst.msk [vmem:[%s193 + $0x28] sm:$0xff] %vm198, 0.0
          %221 = vst.msk [vmem:[%s193 + $0x30] sm:$0xff] %vm198, 0.0
          %222 = vst.msk [vmem:[%s193 + $0x38] sm:$0xff] %vm198, 0.0
          %223 = vst.msk [vmem:[%s193 + $0x40] sm:$0xff] %vm198, 0.0
          %224 = vst.msk [vmem:[%s193 + $0x48] sm:$0xff] %vm198, 0.0
          %225 = vst.msk [vmem:[%s193 + $0x50] sm:$0xff] %vm198, 0.0
          %226 = vst.msk [vmem:[%s193 + $0x58] sm:$0xff] %vm198, 0.0
          %227 = vst.msk [vmem:[%s193 + $0x60] sm:$0xff] %vm198, 0.0
          %228 = vst.msk [vmem:[%s193 + $0x68] sm:$0xff] %vm198, 0.0
          %229 = vst.msk [vmem:[%s193 + $0x70] sm:$0xff] %vm198, 0.0
          %230 = vst.msk [vmem:[%s193 + $0x78] sm:$0xff] %vm198, 0.0
        $region32: #{tpu_custom_call.1} parent=23 // pred_fallthru
          _
        %v231 = vld [vmem:[%s157] sm:$0xff]
        %v232 = vld [vmem:[%s157 + $0x8] sm:$0xff]
        %v233 = vld [vmem:[%s157 + $0x10] sm:$0xff]
        %v234 = vld [vmem:[%s157 + $0x18] sm:$0xff]
        %v235 = vld [vmem:[%s157 + $0x20] sm:$0xff]
        %v236 = vld [vmem:[%s157 + $0x28] sm:$0xff]
        %v237 = vld [vmem:[%s157 + $0x30] sm:$0xff]
        %v238 = vld [vmem:[%s157 + $0x38] sm:$0xff]
        %v239 = vld [vmem:[%s157 + $0x40] sm:$0xff]
        %v240 = vld [vmem:[%s157 + $0x48] sm:$0xff]
        %v241 = vld [vmem:[%s157 + $0x50] sm:$0xff]
        %v242 = vld [vmem:[%s157 + $0x58] sm:$0xff]
        %v243 = vld [vmem:[%s157 + $0x60] sm:$0xff]
        %v244 = vld [vmem:[%s157 + $0x68] sm:$0xff]
        %v245 = vld [vmem:[%s157 + $0x70] sm:$0xff]
        %v246 = vld [vmem:[%s157 + $0x78] sm:$0xff]
        %v247 = vld [vmem:[%s157 + $0x80] sm:$0xff]
        %v248 = vld [vmem:[%s157 + $0x88] sm:$0xff]
        %v249 = vld [vmem:[%s157 + $0x90] sm:$0xff]
        %v250 = vld [vmem:[%s157 + $0x98] sm:$0xff]
        %v251 = vld [vmem:[%s157 + $0xa0] sm:$0xff]
        %v252 = vld [vmem:[%s157 + $0xa8] sm:$0xff]
        %v253 = vld [vmem:[%s157 + $0xb0] sm:$0xff]
        %v254 = vld [vmem:[%s157 + $0xb8] sm:$0xff]
        %v255 = vld [vmem:[%s157 + $0xc0] sm:$0xff]
        %v256 = vld [vmem:[%s157 + $0xc8] sm:$0xff]
        %v257 = vld [vmem:[%s157 + $0xd0] sm:$0xff]
        %v258 = vld [vmem:[%s157 + $0xd8] sm:$0xff]
        %v259 = vld [vmem:[%s157 + $0xe0] sm:$0xff]
        %v260 = vld [vmem:[%s157 + $0xe8] sm:$0xff]
        %v261 = vld [vmem:[%s157 + $0xf0] sm:$0xff]
        %v262 = vld [vmem:[%s157 + $0xf8] sm:$0xff]
        %v263 = vld [vmem:[%s188] sm:$0xff]
        %v264 = vld [vmem:[%s188 + $0x8] sm:$0xff]
        %v265 = vld [vmem:[%s188 + $0x10] sm:$0xff]
        %v266 = vld [vmem:[%s188 + $0x18] sm:$0xff]
        %v267 = vld [vmem:[%s188 + $0x20] sm:$0xff]
        %v268 = vld [vmem:[%s188 + $0x28] sm:$0xff]
        %v269 = vld [vmem:[%s188 + $0x30] sm:$0xff]
        %v270 = vld [vmem:[%s188 + $0x38] sm:$0xff]
        %v271 = vld [vmem:[%s188 + $0x40] sm:$0xff]
        %v272 = vld [vmem:[%s188 + $0x48] sm:$0xff]
        %v273 = vld [vmem:[%s188 + $0x50] sm:$0xff]
        %v274 = vld [vmem:[%s188 + $0x58] sm:$0xff]
        %v275 = vld [vmem:[%s188 + $0x60] sm:$0xff]
        %v276 = vld [vmem:[%s188 + $0x68] sm:$0xff]
        %v277 = vld [vmem:[%s188 + $0x70] sm:$0xff]
        %v278 = vld [vmem:[%s188 + $0x78] sm:$0xff]
        %v279 = vadd.f32 %v231, %v232
        %280 = vadd.xlane.f32.xlu0 %v279
        %v281 = vpop.xlane.xlu0 %280
        %v282 = vadd.f32 %v233, %v234
        %283 = vadd.xlane.f32.xlu0 %v282
        %v284 = vpop.xlane.xlu0 %283
        %v285 = vadd.f32 %v235, %v236
        %286 = vadd.xlane.f32.xlu0 %v285
        %v287 = vpop.xlane.xlu0 %286
        %v288 = vadd.f32 %v237, %v238
        %289 = vadd.xlane.f32.xlu0 %v288
        %v290 = vpop.xlane.xlu0 %289
        %v291 = vadd.f32 %v239, %v240
        %292 = vadd.xlane.f32.xlu0 %v291
        %v293 = vpop.xlane.xlu0 %292
        %v294 = vadd.f32 %v241, %v242
        %295 = vadd.xlane.f32.xlu0 %v294
        %v296 = vpop.xlane.xlu0 %295
        %v297 = vadd.f32 %v243, %v244
        %298 = vadd.xlane.f32.xlu0 %v297
        %v299 = vpop.xlane.xlu0 %298
        %v300 = vadd.f32 %v245, %v246
        %301 = vadd.xlane.f32.xlu0 %v300
        %v302 = vpop.xlane.xlu0 %301
        %v303 = vadd.f32 %v247, %v248
        %304 = vadd.xlane.f32.xlu0 %v303
        %v305 = vpop.xlane.xlu0 %304
        %v306 = vadd.f32 %v249, %v250
        %307 = vadd.xlane.f32.xlu0 %v306
        %v308 = vpop.xlane.xlu0 %307
        %v309 = vadd.f32 %v251, %v252
        %310 = vadd.xlane.f32.xlu0 %v309
        %v311 = vpop.xlane.xlu0 %310
        %v312 = vadd.f32 %v253, %v254
        %313 = vadd.xlane.f32.xlu0 %v312
        %v314 = vpop.xlane.xlu0 %313
        %v315 = vadd.f32 %v255, %v256
        %316 = vadd.xlane.f32.xlu0 %v315
        %v317 = vpop.xlane.xlu0 %316
        %v318 = vadd.f32 %v257, %v258
        %319 = vadd.xlane.f32.xlu0 %v318
        %v320 = vpop.xlane.xlu0 %319
        %v321 = vadd.f32 %v259, %v260
        %322 = vadd.xlane.f32.xlu0 %v321
        %v323 = vpop.xlane.xlu0 %322
        %v324 = vadd.f32 %v261, %v262
        %325 = vadd.xlane.f32.xlu0 %v324
        %v326 = vpop.xlane.xlu0 %325
        %v327 = vadd.f32 %v263, %v281
        %v328 = vadd.f32 %v264, %v284
        %v329 = vadd.f32 %v265, %v287
        %v330 = vadd.f32 %v266, %v290
        %v331 = vadd.f32 %v267, %v293
        %v332 = vadd.f32 %v268, %v296
        %v333 = vadd.f32 %v269, %v299
        %v334 = vadd.f32 %v270, %v302
        %v335 = vadd.f32 %v271, %v305
        %v336 = vadd.f32 %v272, %v308
        %v337 = vadd.f32 %v273, %v311
        %v338 = vadd.f32 %v274, %v314
        %v339 = vadd.f32 %v275, %v317
        %v340 = vadd.f32 %v276, %v320
        %v341 = vadd.f32 %v277, %v323
        %v342 = vadd.f32 %v278, %v326
        %vm343 = vcmask 7168
        %344 = vst.msk [vmem:[%s188] sm:$0xff] %vm343, %v327
        %345 = vst.msk [vmem:[%s188 + $0x8] sm:$0xff] %vm343, %v328
        %346 = vst.msk [vmem:[%s188 + $0x10] sm:$0xff] %vm343, %v329
        %347 = vst.msk [vmem:[%s188 + $0x18] sm:$0xff] %vm343, %v330
        %348 = vst.msk [vmem:[%s188 + $0x20] sm:$0xff] %vm343, %v331
        %349 = vst.msk [vmem:[%s188 + $0x28] sm:$0xff] %vm343, %v332
        %350 = vst.msk [vmem:[%s188 + $0x30] sm:$0xff] %vm343, %v333
        %351 = vst.msk [vmem:[%s188 + $0x38] sm:$0xff] %vm343, %v334
        %352 = vst.msk [vmem:[%s188 + $0x40] sm:$0xff] %vm343, %v335
        %353 = vst.msk [vmem:[%s188 + $0x48] sm:$0xff] %vm343, %v336
        %354 = vst.msk [vmem:[%s188 + $0x50] sm:$0xff] %vm343, %v337
        %355 = vst.msk [vmem:[%s188 + $0x58] sm:$0xff] %vm343, %v338
        %356 = vst.msk [vmem:[%s188 + $0x60] sm:$0xff] %vm343, %v339
        %357 = vst.msk [vmem:[%s188 + $0x68] sm:$0xff] %vm343, %v340
        %358 = vst.msk [vmem:[%s188 + $0x70] sm:$0xff] %vm343, %v341
        %359 = vst.msk [vmem:[%s188 + $0x78] sm:$0xff] %vm343, %v342
        %v360 = vld [vmem:[%s193] sm:$0xff]
        %v361 = vld [vmem:[%s193 + $0x8] sm:$0xff]
        %v362 = vld [vmem:[%s193 + $0x10] sm:$0xff]
        %v363 = vld [vmem:[%s193 + $0x18] sm:$0xff]
        %v364 = vld [vmem:[%s193 + $0x20] sm:$0xff]
        %v365 = vld [vmem:[%s193 + $0x28] sm:$0xff]
        %v366 = vld [vmem:[%s193 + $0x30] sm:$0xff]
        %v367 = vld [vmem:[%s193 + $0x38] sm:$0xff]
        %v368 = vld [vmem:[%s193 + $0x40] sm:$0xff]
        %v369 = vld [vmem:[%s193 + $0x48] sm:$0xff]
        %v370 = vld [vmem:[%s193 + $0x50] sm:$0xff]
        %v371 = vld [vmem:[%s193 + $0x58] sm:$0xff]
        %v372 = vld [vmem:[%s193 + $0x60] sm:$0xff]
        %v373 = vld [vmem:[%s193 + $0x68] sm:$0xff]
        %v374 = vld [vmem:[%s193 + $0x70] sm:$0xff]
        %v375 = vld [vmem:[%s193 + $0x78] sm:$0xff]
        %v376 = vmul.f32 %v231, %v231
        %v377 = vmul.f32 %v232, %v232
        %v378 = vmul.f32 %v233, %v233
        %v379 = vmul.f32 %v234, %v234
        %v380 = vmul.f32 %v235, %v235
        %v381 = vmul.f32 %v236, %v236
        %v382 = vmul.f32 %v237, %v237
        %v383 = vmul.f32 %v238, %v238
        %v384 = vmul.f32 %v239, %v239
        %v385 = vmul.f32 %v240, %v240
        %v386 = vmul.f32 %v241, %v241
        %v387 = vmul.f32 %v242, %v242
        %v388 = vmul.f32 %v243, %v243
        %v389 = vmul.f32 %v244, %v244
        %v390 = vmul.f32 %v245, %v245
        %v391 = vmul.f32 %v246, %v246
        %v392 = vmul.f32 %v247, %v247
        %v393 = vmul.f32 %v248, %v248
        %v394 = vmul.f32 %v249, %v249
        %v395 = vmul.f32 %v250, %v250
        %v396 = vmul.f32 %v251, %v251
        %v397 = vmul.f32 %v252, %v252
        %v398 = vmul.f32 %v253, %v253
        %v399 = vmul.f32 %v254, %v254
        %v400 = vmul.f32 %v255, %v255
        %v401 = vmul.f32 %v256, %v256
        %v402 = vmul.f32 %v257, %v257
        %v403 = vmul.f32 %v258, %v258
        %v404 = vmul.f32 %v259, %v259
        %v405 = vmul.f32 %v260, %v260
        %v406 = vmul.f32 %v261, %v261
        %v407 = vmul.f32 %v262, %v262
        %v408 = vadd.f32 %v376, %v377
        %409 = vadd.xlane.f32.xlu0 %v408
        %v410 = vpop.xlane.xlu0 %409
        %v411 = vadd.f32 %v378, %v379
        %412 = vadd.xlane.f32.xlu0 %v411
        %v413 = vpop.xlane.xlu0 %412
        %v414 = vadd.f32 %v380, %v381
        %415 = vadd.xlane.f32.xlu0 %v414
        %v416 = vpop.xlane.xlu0 %415
        %v417 = vadd.f32 %v382, %v383
        %418 = vadd.xlane.f32.xlu0 %v417
        %v419 = vpop.xlane.xlu0 %418
        %v420 = vadd.f32 %v384, %v385
        %421 = vadd.xlane.f32.xlu0 %v420
        %v422 = vpop.xlane.xlu0 %421
        %v423 = vadd.f32 %v386, %v387
        %424 = vadd.xlane.f32.xlu0 %v423
        %v425 = vpop.xlane.xlu0 %424
        %v426 = vadd.f32 %v388, %v389
        %427 = vadd.xlane.f32.xlu0 %v426
        %v428 = vpop.xlane.xlu0 %427
        %v429 = vadd.f32 %v390, %v391
        %430 = vadd.xlane.f32.xlu0 %v429
        %v431 = vpop.xlane.xlu0 %430
        %v432 = vadd.f32 %v392, %v393
        %433 = vadd.xlane.f32.xlu0 %v432
        %v434 = vpop.xlane.xlu0 %433
        %v435 = vadd.f32 %v394, %v395
        %436 = vadd.xlane.f32.xlu0 %v435
        %v437 = vpop.xlane.xlu0 %436
        %v438 = vadd.f32 %v396, %v397
        %439 = vadd.xlane.f32.xlu0 %v438
        %v440 = vpop.xlane.xlu0 %439
        %v441 = vadd.f32 %v398, %v399
        %442 = vadd.xlane.f32.xlu0 %v441
        %v443 = vpop.xlane.xlu0 %442
        %v444 = vadd.f32 %v400, %v401
        %445 = vadd.xlane.f32.xlu0 %v444
        %v446 = vpop.xlane.xlu0 %445
        %v447 = vadd.f32 %v402, %v403
        %448 = vadd.xlane.f32.xlu0 %v447
        %v449 = vpop.xlane.xlu0 %448
        %v450 = vadd.f32 %v404, %v405
        %451 = vadd.xlane.f32.xlu0 %v450
        %v452 = vpop.xlane.xlu0 %451
        %v453 = vadd.f32 %v406, %v407
        %454 = vadd.xlane.f32.xlu0 %v453
        %v455 = vpop.xlane.xlu0 %454
        %v456 = vadd.f32 %v360, %v410
        %v457 = vadd.f32 %v361, %v413
        %v458 = vadd.f32 %v362, %v416
        %v459 = vadd.f32 %v363, %v419
        %v460 = vadd.f32 %v364, %v422
        %v461 = vadd.f32 %v365, %v425
        %v462 = vadd.f32 %v366, %v428
        %v463 = vadd.f32 %v367, %v431
        %v464 = vadd.f32 %v368, %v434
        %v465 = vadd.f32 %v369, %v437
        %v466 = vadd.f32 %v370, %v440
        %v467 = vadd.f32 %v371, %v443
        %v468 = vadd.f32 %v372, %v446
        %v469 = vadd.f32 %v373, %v449
        %v470 = vadd.f32 %v374, %v452
        %v471 = vadd.f32 %v375, %v455
        %472 = vst.msk [vmem:[%s193] sm:$0xff] %vm343, %v456
        %473 = vst.msk [vmem:[%s193 + $0x8] sm:$0xff] %vm343, %v457
        %474 = vst.msk [vmem:[%s193 + $0x10] sm:$0xff] %vm343, %v458
        %475 = vst.msk [vmem:[%s193 + $0x18] sm:$0xff] %vm343, %v459
        %476 = vst.msk [vmem:[%s193 + $0x20] sm:$0xff] %vm343, %v460
        %477 = vst.msk [vmem:[%s193 + $0x28] sm:$0xff] %vm343, %v461
        %478 = vst.msk [vmem:[%s193 + $0x30] sm:$0xff] %vm343, %v462
        %479 = vst.msk [vmem:[%s193 + $0x38] sm:$0xff] %vm343, %v463
        %480 = vst.msk [vmem:[%s193 + $0x40] sm:$0xff] %vm343, %v464
        %481 = vst.msk [vmem:[%s193 + $0x48] sm:$0xff] %vm343, %v465
        %482 = vst.msk [vmem:[%s193 + $0x50] sm:$0xff] %vm343, %v466
        %483 = vst.msk [vmem:[%s193 + $0x58] sm:$0xff] %vm343, %v467
        %484 = vst.msk [vmem:[%s193 + $0x60] sm:$0xff] %vm343, %v468
        %485 = vst.msk [vmem:[%s193 + $0x68] sm:$0xff] %vm343, %v469
        %486 = vst.msk [vmem:[%s193 + $0x70] sm:$0xff] %vm343, %v470
        %487 = vst.msk [vmem:[%s193 + $0x78] sm:$0xff] %vm343, %v471
        %p488 = scmp.lt.s32.totalorder %s21, 1
        %s489 = scalar_select %p488, %s21, 1
        %s490 = smul.addr %s489, 16
        %s491 = smul.addr %s490, 8
        %s492 = scalar_lea.vmem %s1, %s491
        %p493 = scmp.lt.s32.totalorder %s21, 1
        %s494 = scalar_select %p493, %s21, 1
        %s495 = smul.addr %s494, 16
        %s496 = smul.addr %s495, 8
        %s497 = scalar_lea.vmem %s2, %s496
        // Predicated region
        $region33: #{tpu_custom_call.1} parent=23 // pred_check
          %p498 = pneg %p75
        $region34: #{tpu_custom_call.1} parent=23 // pred_check_branch
          %500 = sbr.rel (%p498) target = $region36
        $region35: #{tpu_custom_call.1} parent=23 // pred_region
          _
        $region36: #{tpu_custom_call.1} parent=23 // pred_fallthru
          _
        // Predicated region
        $region37: #{tpu_custom_call.1} parent=23 // pred_check
          %p501 = pneg %p101
        $region38: #{tpu_custom_call.1} parent=23 // pred_check_branch
          %503 = sbr.rel (%p501) target = $region40
        $region39: #{tpu_custom_call.1} parent=23 // pred_region
          _
        $region40: #{tpu_custom_call.1} parent=23 // pred_fallthru
          _
      $region24: #{tpu_custom_call.1} parent=5 // pred_fallthru
        _
      %p504 = scmp.le.s32.totalorder 2, %s12
      // Predicated region
      $region41: #{tpu_custom_call.1} parent=5 // pred_check
        %p505 = pneg %p504
      $region42: #{tpu_custom_call.1} parent=5 // pred_check_branch
        %507 = sbr.rel (%p505) target = $region44
      $region43: #{tpu_custom_call.1} parent=5 // pred_region
        %s508 = ssub.s32 %s12, 2
        // Predicated region
        $region45: #{tpu_custom_call.1} parent=43 // pred_check
          %p509 = pneg %p81
        $region46: #{tpu_custom_call.1} parent=43 // pred_check_branch
          %511 = sbr.rel (%p509) target = $region48
        $region47: #{tpu_custom_call.1} parent=43 // pred_region
          %p512 = scmp.lt.s32.totalorder %s23, 1
          %s513 = scalar_select %p512, %s23, 1
          %s514 = smul.addr %s513, 16
          %s515 = smul.addr %s514, 8
          %s516 = scalar_lea.vmem %s1, %s515
        $region48: #{tpu_custom_call.1} parent=43 // pred_fallthru
          _
        // Predicated region
        $region49: #{tpu_custom_call.1} parent=43 // pred_check
          %p517 = pneg %p107
        $region50: #{tpu_custom_call.1} parent=43 // pred_check_branch
          %519 = sbr.rel (%p517) target = $region52
        $region51: #{tpu_custom_call.1} parent=43 // pred_region
          %p520 = scmp.lt.s32.totalorder %s23, 1
          %s521 = scalar_select %p520, %s23, 1
          %s522 = smul.addr %s521, 16
          %s523 = smul.addr %s522, 8
          %s524 = scalar_lea.vmem %s2, %s523
        $region52: #{tpu_custom_call.1} parent=43 // pred_fallthru
          _
      $region44: #{tpu_custom_call.1} parent=5 // pred_fallthru
        _
    $region6: #{tpu_custom_call.1} parent=1 // loop_footer
      %s16 = sadd.s32 1, %s12
    $region7: #{tpu_custom_call.1} parent=1 // loop_footer_branch
      %11 = sbr.rel target = $region3
    $region8: #{tpu_custom_call.1} parent=1 // loop_exit
      _
    %525 = vsyncpa [#allocation3], 1
    %s526 = scalar_lea.sflag [#allocation3], 1
    %527 = vsyncpa %s526, 1

</llo_original>
